<compile_context>
chip_gen: v7x
topology: tpu7x:2x2x1
jax: 0.10.0
libtpu: 0.0.40
codegen_flags: <defaults>
</compile_context>

<pallas_src>
import jax
import jax.numpy as jnp
from jax.experimental import pallas as pl
from jax.experimental.pallas import tpu as pltpu


# ------------------------------------------------------------------ kernel ---
def gcn_layer_kernel(a_ref, x_ref, w_ref, b_ref, out_ref, acc_ref):
    """One BN-folded GCN layer: out = ReLU((A_hat @ x) @ W' + b').

    grid = (rows, K); the output block is resident across the K axis.
    a_ref : (TM, TK)        bf16  A_hat tile
    x_ref : (N_pad, Fi) or (TK, Fi) bf16  node features (resident or streamed)
    w_ref : (Fi, Fo)        bf16  BN-folded weight (constant index map)
    b_ref : (1,  Fo)        f32   BN-folded bias   (constant index map)
    acc   : (TM, Fi)        f32   propagation accumulator (scratch)
    """
    k = pl.program_id(1)
    tk = a_ref.shape[1]

    if x_ref.shape[0] == tk:
        # Streamed path: x_ref is already the K-step tile.
        xk = x_ref[...]
    else:
        # Resident path: slice the (tk, Fi) window out of the full VMEM copy.
        start = pl.multiple_of(k * tk, tk)
        xk = x_ref[pl.ds(start, tk), :]

    part = jnp.dot(a_ref[...], xk, preferred_element_type=jnp.float32)

    @pl.when(k == 0)
    def _first():
        # Direct overwrite: skips a full (TM, Fi) f32 zero store per row block.
        acc_ref[...] = part

    @pl.when(k > 0)
    def _accumulate():
        acc_ref[...] += part

    @pl.when(k == pl.num_programs(1) - 1)
    def _finalize():
        # Transform once per row block, then bias + ReLU (BN already folded).
        z = jnp.dot(acc_ref[...].astype(w_ref.dtype), w_ref[...],
                    preferred_element_type=jnp.float32)
        out_ref[...] = jnp.maximum(z + b_ref[...], 0.0).astype(out_ref.dtype)


# ----------------------------------------------------------------- helpers ---
def _round_up(x, m):
    return ((x + m - 1) // m) * m


def _pad2d(x, rows, cols):
    return jnp.pad(x, ((0, rows - x.shape[0]), (0, cols - x.shape[1])))


def _choose_tiles(n):
    """Return (n_pad, tm, tk).

    * n_pad is a multiple of 256 (128 for tiny graphs) -- pad granularity is
      decoupled from tk to limit padding waste.
    * tm <= 512 and keeps >= 2 row blocks whenever n_pad allows, so the
      "parallel" row axis shards across v7x's two TensorCores.
    * tk is the largest divisor of n_pad keeping the bf16 A tile <= ~2 MiB
      per buffer (4 MiB double-buffered).
    """
    if n <= 128:
        return 128, 128, 128          # single tiny tile; grid (1, 1)
    n_pad = _round_up(n, 256)

    if n_pad % 512 == 0 and n_pad >= 1024:
        tm = 512
    elif n_pad % 256 == 0 and n_pad >= 512:
        tm = 256
    else:
        tm = n_pad // 2               # e.g. n_pad == 256 -> tm = 128

    tk = 256
    for cand in (n_pad, 4096, 2048, 1024, 512, 256):
        if cand <= n_pad and n_pad % cand == 0 and tm * cand * 2 <= (2 << 20):
            tk = cand
            break
    return n_pad, tm, tk


def _gcn_layer_call(a, x, w, b, out_dtype, tm, tk):
    """Run one tiled, BN-folded GCN layer via pallas_call."""
    n_pad = a.shape[0]
    fi = x.shape[1]
    fo = w.shape[1]
    grid = (n_pad // tm, n_pad // tk)
    out_bytes = jnp.dtype(out_dtype).itemsize

    # Keep X fully VMEM-resident when cheap (<= 4 MiB bf16); otherwise stream.
    x_resident = (n_pad * fi * 2) <= (4 << 20)
    if x_resident:
        x_spec = pl.BlockSpec((n_pad, fi), lambda i, k: (0, 0))
    else:
        x_spec = pl.BlockSpec((tk, fi), lambda i, k: (k, 0))

    # VMEM budget from the actual buffers (double-buffered pipeline), <=32 MiB.
    a_buf = 2 * tm * tk * 2
    x_buf = 2 * (n_pad * fi * 2 if x_resident else tk * fi * 2)
    w_buf = 2 * fi * fo * 2
    b_buf = 2 * fo * 4
    o_buf = 2 * tm * fo * out_bytes
    acc_buf = tm * fi * 4
    footprint = a_buf + x_buf + w_buf + b_buf + o_buf + acc_buf
    vmem_limit = int(min(32 << 20, max(footprint + (2 << 20), 16 << 20)))

    # Advisory cost estimate so XLA schedules surrounding ops sensibly.
    flops = 2 * n_pad * n_pad * fi + 2 * n_pad * fi * fo
    x_bytes = n_pad * fi * 2 if x_resident else (n_pad // tm) * n_pad * fi * 2
    bytes_accessed = (n_pad * n_pad * 2 + x_bytes + fi * fo * 2 + fo * 4
                      + n_pad * fo * out_bytes)
    cost = pl.CostEstimate(flops=int(flops), transcendentals=0,
                           bytes_accessed=int(bytes_accessed))

    return pl.pallas_call(
        gcn_layer_kernel,
        out_shape=jax.ShapeDtypeStruct((n_pad, fo), out_dtype),
        grid_spec=pltpu.PrefetchScalarGridSpec(
            num_scalar_prefetch=0,
            grid=grid,
            in_specs=[
                pl.BlockSpec((tm, tk), lambda i, k: (i, k)),   # A_hat tile
                x_spec,                                        # node features
                pl.BlockSpec((fi, fo), lambda i, k: (0, 0)),   # W' (resident)
                pl.BlockSpec((1, fo), lambda i, k: (0, 0)),    # b' (resident)
            ],
            out_specs=pl.BlockSpec((tm, fo), lambda i, k: (i, 0)),
            scratch_shapes=[pltpu.VMEM((tm, fi), jnp.float32)],
        ),
        compiler_params=pltpu.CompilerParams(
            dimension_semantics=("parallel", "arbitrary"),
            vmem_limit_bytes=vmem_limit,
        ),
        cost_estimate=cost,
    )(a, x, w, b)


def build_normalized_adjacency_bf16(edge_index, num_nodes, n_pad):
    """A_hat = D^{-1/2} (A + I_remaining) D^{-1/2}, padded, bf16.

    Matches PyG gcn_norm semantics: self-loops are only added for nodes that
    do not already have one (add_remaining_self_loops).  Built, normalized,
    padded and cast in one fused step (run under jit) so only the final
    padded bf16 N x N array is materialized.
    """
    src, dst = edge_index[0], edge_index[1]
    # A[i, j] = weight of edge j -> i (messages aggregate at the target).
    a = jnp.zeros((num_nodes, num_nodes), jnp.float32).at[dst, src].add(1.0)
    diag = jnp.diagonal(a)
    a = a + jnp.diag(jnp.where(diag == 0.0, 1.0, 0.0))
    deg = a.sum(axis=1)
    dinv = jnp.where(deg > 0, 1.0 / jnp.sqrt(deg), 0.0)
    a = dinv[:, None] * a * dinv[None, :]
    a = jnp.pad(a, ((0, n_pad - num_nodes), (0, n_pad - num_nodes)))
    return a.astype(jnp.bfloat16)


# ----------------------------------------------------------------- wrapper ---
def gcn_feature_extraction_forward(x, edge_index, params):
    n, f_in = x.shape
    f_hid = params["w1"].shape[1]
    f_out = params["w2"].shape[1]

    # --- fold eval-mode BatchNorm1d into the GCN weights / biases ------------
    eps = 1e-5
    s1 = params["bn1_gamma"] / jnp.sqrt(params["bn1_var"] + eps)
    t1 = params["bn1_beta"] - params["bn1_mean"] * s1
    s2 = params["bn2_gamma"] / jnp.sqrt(params["bn2_var"] + eps)
    t2 = params["bn2_beta"] - params["bn2_mean"] * s2
    w1f = params["w1"] * s1[None, :]
    b1f = params["b1"] * s1 + t1
    w2f = params["w2"] * s2[None, :]
    b2f = params["b2"] * s2 + t2

    # --- tile choice + padding (lane-dense 128 multiples) ---------------------
    n_pad, tm, tk = _choose_tiles(n)
    fi_pad = _round_up(f_in, 128)
    fh_pad = _round_up(f_hid, 128)
    fo_pad = _round_up(f_out, 128)

    # TODO(synk): cache a_p across forward calls keyed on edge_index.
    a_p = build_normalized_adjacency_bf16(edge_index, n, n_pad)
    x_p = _pad2d(x.astype(jnp.float32), n_pad, fi_pad).astype(jnp.bfloat16)
    w1_p = _pad2d(w1f, fi_pad, fh_pad).astype(jnp.bfloat16)
    b1_p = _pad2d(b1f.reshape(1, -1), 1, fh_pad).astype(jnp.float32)
    w2_p = _pad2d(w2f, fh_pad, fo_pad).astype(jnp.bfloat16)
    b2_p = _pad2d(b2f.reshape(1, -1), 1, fo_pad).astype(jnp.float32)

    # --- layer 1 (h stays bf16 in HBM: it is the layer-2 MXU input) ----------
    h = _gcn_layer_call(a_p, x_p, w1_p, b1_p, jnp.bfloat16, tm, tk)
    # --- layer 2 (final output in f32) ----------------------------------------
    y = _gcn_layer_call(a_p, h, w2_p, b2_p, jnp.float32, tm, tk)

    return y[:n, :f_out]


# --------------------------------------------------------------- init utils --
def make_params(key, input_bands, output_bands):
    f_in, f_hid, f_out = input_bands, 2 * input_bands, output_bands
    k1, k2 = jax.random.split(key, 2)

    def glorot(k, fan_in, fan_out):
        lim = jnp.sqrt(6.0 / (fan_in + fan_out))
        return jax.random.uniform(k, (fan_in, fan_out), jnp.float32, -lim, lim)

    return {
        "w1": glorot(k1, f_in, f_hid),
        "b1": jnp.zeros((f_hid,), jnp.float32),
        "bn1_gamma": jnp.ones((f_hid,), jnp.float32),
        "bn1_beta": jnp.zeros((f_hid,), jnp.float32),
        "bn1_mean": jnp.zeros((f_hid,), jnp.float32),
        "bn1_var": jnp.ones((f_hid,), jnp.float32),
        "w2": glorot(k2, f_hid, f_out),
        "b2": jnp.zeros((f_out,), jnp.float32),
        "bn2_gamma": jnp.ones((f_out,), jnp.float32),
        "bn2_beta": jnp.zeros((f_out,), jnp.float32),
        "bn2_mean": jnp.zeros((f_out,), jnp.float32),
        "bn2_var": jnp.ones((f_out,), jnp.float32),
    }


# ---------------------------------------------------------------------- main -
if __name__ == "__main__":
    key = jax.random.PRNGKey(0)
    kx, ke, kp = jax.random.split(key, 3)

    num_nodes = 64
    input_bands = 8
    output_bands = 16
    num_edges = 128

    # node features (N, F_in) and a random directed edge list (2, E)
    x = jax.random.normal(kx, (num_nodes, input_bands), jnp.float32)
    edge_index = jax.random.randint(ke, (2, num_edges), 0, num_nodes,
                                    dtype=jnp.int32)

    params = make_params(kp, input_bands, output_bands)

    forward = jax.jit(gcn_feature_extraction_forward)
    out = forward(x, edge_index, params)
    out = jax.block_until_ready(out)

    assert out.shape == (num_nodes, output_bands)
    assert bool(jnp.all(jnp.isfinite(out)))
    print("KERNEL_OK")
</pallas_src>

<mosaic_0001>
module attributes {stable_mosaic.version = 11 : i64} {
  func.func private @main(%arg0: i32) attributes {dimension_semantics = [#tpu.dimension_semantics<core_parallel>], iteration_bounds = array<i64: 2>, tpu.core_type = #tpu.core_type<sc_scalar_subcore>, window_params = []} {
    return
  }
}

module attributes {stable_mosaic.version = 11 : i64} {
  func.func private @main(%arg0: i32) attributes {dimension_semantics = [#tpu.dimension_semantics<core_parallel>], iteration_bounds = array<i64: 2>, tpu.core_type = #tpu.core_type<sc_scalar_subcore>, window_params = []} {
    return
  }
}

module attributes {stable_mosaic.version = 11 : i64} {
  func.func @gcn_layer_kernel(%arg0: i32, %arg1: i32, %arg2: memref<128x128xbf16, #tpu.memory_space<vmem>>, %arg3: memref<128x128xbf16, #tpu.memory_space<vmem>>, %arg4: memref<128x128xbf16, #tpu.memory_space<vmem>>, %arg5: memref<1x128xf32, #tpu.memory_space<vmem>>, %arg6: memref<128x128xbf16, #tpu.memory_space<vmem>>, %arg7: memref<128x128xf32, #tpu.memory_space<vmem>>) attributes {dimension_semantics = [#tpu.dimension_semantics<parallel>, #tpu.dimension_semantics<arbitrary>], iteration_bounds = array<i64: 1, 1>, scalar_prefetch = 0 : i64, scratch_operands = 1 : i64, tpu.core_type = #tpu.core_type<tc>, window_params = [{transform_indices = @transform_0, window_bounds = array<i64: 128, 128>}, {pipeline_mode = #tpu.pipeline_mode<synchronous>, transform_indices = @transform_1, window_bounds = array<i64: 128, 128>}, {pipeline_mode = #tpu.pipeline_mode<synchronous>, transform_indices = @transform_2, window_bounds = array<i64: 128, 128>}, {pipeline_mode = #tpu.pipeline_mode<synchronous>, transform_indices = @transform_3, window_bounds = array<i64: 1, 128>}, {transform_indices = @transform_4, window_bounds = array<i64: 128, 128>}]} {
    %c0 = arith.constant 0 : index
    %c0_0 = arith.constant 0 : index
    %0 = vector.load %arg3[%c0, %c0_0] : memref<128x128xbf16, #tpu.memory_space<vmem>>, vector<128x128xbf16>
    %c0_1 = arith.constant 0 : index
    %c0_2 = arith.constant 0 : index
    %1 = vector.load %arg2[%c0_1, %c0_2] : memref<128x128xbf16, #tpu.memory_space<vmem>>, vector<128x128xbf16>
    %cst = arith.constant dense<0.000000e+00> : vector<128x128xf32>
    %2 = tpu.matmul %1, %0, %cst {dimension_numbers = #tpu.dot_dimension_numbers<[1], [0], [0], [1], [0, 0, 1, 1], [], []>} : vector<128x128xbf16>, vector<128x128xbf16>, vector<128x128xf32> -> vector<128x128xf32>
    %c0_i32 = arith.constant 0 : i32
    %3 = arith.cmpi eq, %arg1, %c0_i32 : i32
    %4 = arith.extui %3 : i1 to i32
    %c0_i32_3 = arith.constant 0 : i32
    %5 = arith.cmpi ne, %4, %c0_i32_3 : i32
    scf.if %5 {
      %c0_8 = arith.constant 0 : index
      %c0_9 = arith.constant 0 : index
      %12 = vector.load %arg7[%c0_8, %c0_9] : memref<128x128xf32, #tpu.memory_space<vmem>>, vector<128x128xf32>
      tpu.vector_store %arg7[%c0_8, %c0_9], %2 {strides = array<i32>} : memref<128x128xf32, #tpu.memory_space<vmem>>, vector<128x128xf32>,
    } else {
    }
    %c0_i32_4 = arith.constant 0 : i32
    %6 = arith.cmpi sgt, %arg1, %c0_i32_4 : i32
    %7 = arith.extui %6 : i1 to i32
    %c0_i32_5 = arith.constant 0 : i32
    %8 = arith.cmpi ne, %7, %c0_i32_5 : i32
    scf.if %8 {
      %c0_8 = arith.constant 0 : index
      %c0_9 = arith.constant 0 : index
      %12 = vector.load %arg7[%c0_8, %c0_9] : memref<128x128xf32, #tpu.memory_space<vmem>>, vector<128x128xf32>
      %13 = arith.addf %12, %2 : vector<128x128xf32>
      %c0_10 = arith.constant 0 : index
      %c0_11 = arith.constant 0 : index
      %14 = vector.load %arg7[%c0_10, %c0_11] : memref<128x128xf32, #tpu.memory_space<vmem>>, vector<128x128xf32>
      tpu.vector_store %arg7[%c0_10, %c0_11], %13 {strides = array<i32>} : memref<128x128xf32, #tpu.memory_space<vmem>>, vector<128x128xf32>,
    } else {
    }
    %c0_i32_6 = arith.constant 0 : i32
    %9 = arith.cmpi eq, %arg1, %c0_i32_6 : i32
    %10 = arith.extui %9 : i1 to i32
    %c0_i32_7 = arith.constant 0 : i32
    %11 = arith.cmpi ne, %10, %c0_i32_7 : i32
    scf.if %11 {
      %c0_8 = arith.constant 0 : index
      %c0_9 = arith.constant 0 : index
      %12 = vector.load %arg7[%c0_8, %c0_9] : memref<128x128xf32, #tpu.memory_space<vmem>>, vector<128x128xf32>
      %13 = arith.truncf %12 : vector<128x128xf32> to vector<128x128xbf16>
      %c0_10 = arith.constant 0 : index
      %c0_11 = arith.constant 0 : index
      %14 = vector.load %arg4[%c0_10, %c0_11] : memref<128x128xbf16, #tpu.memory_space<vmem>>, vector<128x128xbf16>
      %cst_12 = arith.constant dense<0.000000e+00> : vector<128x128xf32>
      %15 = tpu.matmul %13, %14, %cst_12 {dimension_numbers = #tpu.dot_dimension_numbers<[1], [0], [0], [1], [0, 0, 1, 1], [], []>} : vector<128x128xbf16>, vector<128x128xbf16>, vector<128x128xf32> -> vector<128x128xf32>
      %c0_13 = arith.constant 0 : index
      %c0_14 = arith.constant 0 : index
      %16 = vector.load %arg5[%c0_13, %c0_14] : memref<1x128xf32, #tpu.memory_space<vmem>>, vector<1x128xf32>
      %17 = vector.broadcast %16 : vector<1x128xf32> to vector<128x128xf32>
      %18 = arith.addf %15, %17 : vector<128x128xf32>
      %cst_15 = arith.constant 0.000000e+00 : f32
      %19 = vector.broadcast %cst_15 : f32 to vector<128x128xf32>
      %20 = arith.maximumf %18, %19 : vector<128x128xf32>
      %21 = arith.truncf %20 : vector<128x128xf32> to vector<128x128xbf16>
      %c0_16 = arith.constant 0 : index
      %c0_17 = arith.constant 0 : index
      %22 = vector.load %arg6[%c0_16, %c0_17] : memref<128x128xbf16, #tpu.memory_space<vmem>>, vector<128x128xbf16>
      tpu.vector_store %arg6[%c0_16, %c0_17], %21 {strides = array<i32>} : memref<128x128xbf16, #tpu.memory_space<vmem>>, vector<128x128xbf16>,
    } else {
    }
    return
  }
  func.func @transform_0(%arg0: i32, %arg1: i32) -> (i32, i32) {
    %c0_i32 = arith.constant 0 : i32
    return %arg0, %arg1 : i32, i32
  }
  func.func @transform_1(%arg0: i32, %arg1: i32) -> (i32, i32) {
    %c0_i32 = arith.constant 0 : i32
    %c0_i32_0 = arith.constant 0 : i32
    %c0_i32_1 = arith.constant 0 : i32
    return %c0_i32, %c0_i32_0 : i32, i32
  }
  func.func @transform_2(%arg0: i32, %arg1: i32) -> (i32, i32) {
    %c0_i32 = arith.constant 0 : i32
    %c0_i32_0 = arith.constant 0 : i32
    %c0_i32_1 = arith.constant 0 : i32
    return %c0_i32, %c0_i32_0 : i32, i32
  }
  func.func @transform_3(%arg0: i32, %arg1: i32) -> (i32, i32) {
    %c0_i32 = arith.constant 0 : i32
    %c0_i32_0 = arith.constant 0 : i32
    %c0_i32_1 = arith.constant 0 : i32
    return %c0_i32, %c0_i32_0 : i32, i32
  }
  func.func @transform_4(%arg0: i32, %arg1: i32) -> (i32, i32) {
    %c0_i32 = arith.constant 0 : i32
    %c0_i32_0 = arith.constant 0 : i32
    return %arg0, %c0_i32 : i32, i32
  }
}

module attributes {stable_mosaic.version = 11 : i64} {
  func.func @gcn_layer_kernel(%arg0: i32, %arg1: i32, %arg2: memref<128x128xbf16, #tpu.memory_space<vmem>>, %arg3: memref<128x128xbf16, #tpu.memory_space<vmem>>, %arg4: memref<128x128xbf16, #tpu.memory_space<vmem>>, %arg5: memref<1x128xf32, #tpu.memory_space<vmem>>, %arg6: memref<128x128xf32, #tpu.memory_space<vmem>>, %arg7: memref<128x128xf32, #tpu.memory_space<vmem>>) attributes {dimension_semantics = [#tpu.dimension_semantics<parallel>, #tpu.dimension_semantics<arbitrary>], iteration_bounds = array<i64: 1, 1>, scalar_prefetch = 0 : i64, scratch_operands = 1 : i64, tpu.core_type = #tpu.core_type<tc>, window_params = [{transform_indices = @transform_0, window_bounds = array<i64: 128, 128>}, {pipeline_mode = #tpu.pipeline_mode<synchronous>, transform_indices = @transform_1, window_bounds = array<i64: 128, 128>}, {pipeline_mode = #tpu.pipeline_mode<synchronous>, transform_indices = @transform_2, window_bounds = array<i64: 128, 128>}, {pipeline_mode = #tpu.pipeline_mode<synchronous>, transform_indices = @transform_3, window_bounds = array<i64: 1, 128>}, {transform_indices = @transform_4, window_bounds = array<i64: 128, 128>}]} {
    %c0 = arith.constant 0 : index
    %c0_0 = arith.constant 0 : index
    %0 = vector.load %arg3[%c0, %c0_0] : memref<128x128xbf16, #tpu.memory_space<vmem>>, vector<128x128xbf16>
    %c0_1 = arith.constant 0 : index
    %c0_2 = arith.constant 0 : index
    %1 = vector.load %arg2[%c0_1, %c0_2] : memref<128x128xbf16, #tpu.memory_space<vmem>>, vector<128x128xbf16>
    %cst = arith.constant dense<0.000000e+00> : vector<128x128xf32>
    %2 = tpu.matmul %1, %0, %cst {dimension_numbers = #tpu.dot_dimension_numbers<[1], [0], [0], [1], [0, 0, 1, 1], [], []>} : vector<128x128xbf16>, vector<128x128xbf16>, vector<128x128xf32> -> vector<128x128xf32>
    %c0_i32 = arith.constant 0 : i32
    %3 = arith.cmpi eq, %arg1, %c0_i32 : i32
    %4 = arith.extui %3 : i1 to i32
    %c0_i32_3 = arith.constant 0 : i32
    %5 = arith.cmpi ne, %4, %c0_i32_3 : i32
    scf.if %5 {
      %c0_8 = arith.constant 0 : index
      %c0_9 = arith.constant 0 : index
      %12 = vector.load %arg7[%c0_8, %c0_9] : memref<128x128xf32, #tpu.memory_space<vmem>>, vector<128x128xf32>
      tpu.vector_store %arg7[%c0_8, %c0_9], %2 {strides = array<i32>} : memref<128x128xf32, #tpu.memory_space<vmem>>, vector<128x128xf32>,
    } else {
    }
    %c0_i32_4 = arith.constant 0 : i32
    %6 = arith.cmpi sgt, %arg1, %c0_i32_4 : i32
    %7 = arith.extui %6 : i1 to i32
    %c0_i32_5 = arith.constant 0 : i32
    %8 = arith.cmpi ne, %7, %c0_i32_5 : i32
    scf.if %8 {
      %c0_8 = arith.constant 0 : index
      %c0_9 = arith.constant 0 : index
      %12 = vector.load %arg7[%c0_8, %c0_9] : memref<128x128xf32, #tpu.memory_space<vmem>>, vector<128x128xf32>
      %13 = arith.addf %12, %2 : vector<128x128xf32>
      %c0_10 = arith.constant 0 : index
      %c0_11 = arith.constant 0 : index
      %14 = vector.load %arg7[%c0_10, %c0_11] : memref<128x128xf32, #tpu.memory_space<vmem>>, vector<128x128xf32>
      tpu.vector_store %arg7[%c0_10, %c0_11], %13 {strides = array<i32>} : memref<128x128xf32, #tpu.memory_space<vmem>>, vector<128x128xf32>,
    } else {
    }
    %c0_i32_6 = arith.constant 0 : i32
    %9 = arith.cmpi eq, %arg1, %c0_i32_6 : i32
    %10 = arith.extui %9 : i1 to i32
    %c0_i32_7 = arith.constant 0 : i32
    %11 = arith.cmpi ne, %10, %c0_i32_7 : i32
    scf.if %11 {
      %c0_8 = arith.constant 0 : index
      %c0_9 = arith.constant 0 : index
      %12 = vector.load %arg7[%c0_8, %c0_9] : memref<128x128xf32, #tpu.memory_space<vmem>>, vector<128x128xf32>
      %13 = arith.truncf %12 : vector<128x128xf32> to vector<128x128xbf16>
      %c0_10 = arith.constant 0 : index
      %c0_11 = arith.constant 0 : index
      %14 = vector.load %arg4[%c0_10, %c0_11] : memref<128x128xbf16, #tpu.memory_space<vmem>>, vector<128x128xbf16>
      %cst_12 = arith.constant dense<0.000000e+00> : vector<128x128xf32>
      %15 = tpu.matmul %13, %14, %cst_12 {dimension_numbers = #tpu.dot_dimension_numbers<[1], [0], [0], [1], [0, 0, 1, 1], [], []>} : vector<128x128xbf16>, vector<128x128xbf16>, vector<128x128xf32> -> vector<128x128xf32>
      %c0_13 = arith.constant 0 : index
      %c0_14 = arith.constant 0 : index
      %16 = vector.load %arg5[%c0_13, %c0_14] : memref<1x128xf32, #tpu.memory_space<vmem>>, vector<1x128xf32>
      %17 = vector.broadcast %16 : vector<1x128xf32> to vector<128x128xf32>
      %18 = arith.addf %15, %17 : vector<128x128xf32>
      %cst_15 = arith.constant 0.000000e+00 : f32
      %19 = vector.broadcast %cst_15 : f32 to vector<128x128xf32>
      %20 = arith.maximumf %18, %19 : vector<128x128xf32>
      %c0_16 = arith.constant 0 : index
      %c0_17 = arith.constant 0 : index
      %21 = vector.load %arg6[%c0_16, %c0_17] : memref<128x128xf32, #tpu.memory_space<vmem>>, vector<128x128xf32>
      tpu.vector_store %arg6[%c0_16, %c0_17], %20 {strides = array<i32>} : memref<128x128xf32, #tpu.memory_space<vmem>>, vector<128x128xf32>,
    } else {
    }
    return
  }
  func.func @transform_0(%arg0: i32, %arg1: i32) -> (i32, i32) {
    %c0_i32 = arith.constant 0 : i32
    return %arg0, %arg1 : i32, i32
  }
  func.func @transform_1(%arg0: i32, %arg1: i32) -> (i32, i32) {
    %c0_i32 = arith.constant 0 : i32
    %c0_i32_0 = arith.constant 0 : i32
    %c0_i32_1 = arith.constant 0 : i32
    return %c0_i32, %c0_i32_0 : i32, i32
  }
  func.func @transform_2(%arg0: i32, %arg1: i32) -> (i32, i32) {
    %c0_i32 = arith.constant 0 : i32
    %c0_i32_0 = arith.constant 0 : i32
    %c0_i32_1 = arith.constant 0 : i32
    return %c0_i32, %c0_i32_0 : i32, i32
  }
  func.func @transform_3(%arg0: i32, %arg1: i32) -> (i32, i32) {
    %c0_i32 = arith.constant 0 : i32
    %c0_i32_0 = arith.constant 0 : i32
    %c0_i32_1 = arith.constant 0 : i32
    return %c0_i32, %c0_i32_0 : i32, i32
  }
  func.func @transform_4(%arg0: i32, %arg1: i32) -> (i32, i32) {
    %c0_i32 = arith.constant 0 : i32
    %c0_i32_0 = arith.constant 0 : i32
    return %arg0, %c0_i32 : i32, i32
  }
}

</mosaic_0001>

<llo_original>
// kernel: gcn_feature_extraction_forward.2
$region0: #{gcn_feature_extraction_forward.2}
  #allocation0 [shape = 'u32[]', space=smem, size = 0x4, offset = 0x4, fixed_abs, tag = 'smem constant byte address 0x4 - core index']
  #allocation1 [shape = 'u32[144,128]{1,0:T(1,128)}', space=vmem, size = 0x12000, scoped, tag = 'internal scratch']
  #allocation2 [shape = 'f32[128,128]{1,0:T(8,128)}', space=vmem, size = 0x10000, scoped, tag = 'scratch operand']
  %s0 = inlined_call_operand.vmem [shape: bf16[128,128], index: 0, kind: input, shape index: {}]
  %s1 = inlined_call_operand.vmem [shape: bf16[128,128], index: 1, kind: input, shape index: {}]
  %s2 = inlined_call_operand.vmem [shape: bf16[128,128], index: 2, kind: input, shape index: {}]
  %s3 = inlined_call_operand.vmem [shape: f32[1,128], index: 3, kind: input, shape index: {}]
  %s4 = inlined_call_operand.vmem [shape: bf16[128,128], index: 4, kind: output, shape index: {}]
  %s5 = sld [smem:[#allocation0]]
  $region38: #{gcn_feature_extraction_forward.2} parent=0
    _
  %s7 = ssub.s32 1, %s5
  %s8 = scalar_select 0, %s7, %s5
  // Predicated region
  $region2: #{gcn_feature_extraction_forward.2} parent=0 // pred_check
    _
  $region3: #{gcn_feature_extraction_forward.2} parent=0 // pred_check_branch
    %10 = sbr.rel (0) target = $region5
  $region4: #{gcn_feature_extraction_forward.2} parent=0 // pred_region
    _
  $region5: #{gcn_feature_extraction_forward.2} parent=0 // pred_fallthru
    _
  // Predicated region
  $region6: #{gcn_feature_extraction_forward.2} parent=0 // pred_check
    _
  $region7: #{gcn_feature_extraction_forward.2} parent=0 // pred_check_branch
    %12 = sbr.rel (0) target = $region9
  $region8: #{gcn_feature_extraction_forward.2} parent=0 // pred_region
    _
  $region9: #{gcn_feature_extraction_forward.2} parent=0 // pred_fallthru
    _
  // Predicated region
  $region10: #{gcn_feature_extraction_forward.2} parent=0 // pred_check
    _
  $region11: #{gcn_feature_extraction_forward.2} parent=0 // pred_check_branch
    %14 = sbr.rel (0) target = $region13
  $region12: #{gcn_feature_extraction_forward.2} parent=0 // pred_region
    _
  $region13: #{gcn_feature_extraction_forward.2} parent=0 // pred_fallthru
    _
  // Predicated region
  $region14: #{gcn_feature_extraction_forward.2} parent=0 // pred_check
    _
  $region15: #{gcn_feature_extraction_forward.2} parent=0 // pred_check_branch
    %16 = sbr.rel (0) target = $region17
  $region16: #{gcn_feature_extraction_forward.2} parent=0 // pred_region
    _
  $region17: #{gcn_feature_extraction_forward.2} parent=0 // pred_fallthru
    _
  %v18 = vld [vmem:[%s1] sm:$0xf]
  %v19 = vld [vmem:[%s1 + $0x4] sm:$0xf]
  %v20 = vld [vmem:[%s1 + $0x8] sm:$0xf]
  %v21 = vld [vmem:[%s1 + $0xc] sm:$0xf]
  %v22 = vld [vmem:[%s1 + $0x10] sm:$0xf]
  %v23 = vld [vmem:[%s1 + $0x14] sm:$0xf]
  %v24 = vld [vmem:[%s1 + $0x18] sm:$0xf]
  %v25 = vld [vmem:[%s1 + $0x1c] sm:$0xf]
  %v26 = vld [vmem:[%s1 + $0x20] sm:$0xf]
  %v27 = vld [vmem:[%s1 + $0x24] sm:$0xf]
  %v28 = vld [vmem:[%s1 + $0x28] sm:$0xf]
  %v29 = vld [vmem:[%s1 + $0x2c] sm:$0xf]
  %v30 = vld [vmem:[%s1 + $0x30] sm:$0xf]
  %v31 = vld [vmem:[%s1 + $0x34] sm:$0xf]
  %v32 = vld [vmem:[%s1 + $0x38] sm:$0xf]
  %v33 = vld [vmem:[%s1 + $0x3c] sm:$0xf]
  %v34 = vld [vmem:[%s0] sm:$0xf]
  %v35 = vld [vmem:[%s0 + $0x4] sm:$0xf]
  %v36 = vld [vmem:[%s0 + $0x8] sm:$0xf]
  %v37 = vld [vmem:[%s0 + $0xc] sm:$0xf]
  %v38 = vld [vmem:[%s0 + $0x10] sm:$0xf]
  %v39 = vld [vmem:[%s0 + $0x14] sm:$0xf]
  %v40 = vld [vmem:[%s0 + $0x18] sm:$0xf]
  %v41 = vld [vmem:[%s0 + $0x1c] sm:$0xf]
  %v42 = vld [vmem:[%s0 + $0x20] sm:$0xf]
  %v43 = vld [vmem:[%s0 + $0x24] sm:$0xf]
  %v44 = vld [vmem:[%s0 + $0x28] sm:$0xf]
  %v45 = vld [vmem:[%s0 + $0x2c] sm:$0xf]
  %v46 = vld [vmem:[%s0 + $0x30] sm:$0xf]
  %v47 = vld [vmem:[%s0 + $0x34] sm:$0xf]
  %v48 = vld [vmem:[%s0 + $0x38] sm:$0xf]
  %v49 = vld [vmem:[%s0 + $0x3c] sm:$0xf]
  %v66 = vunpack.c.l.b16 %v34
  %v67 = vunpack.c.l.b16 %v35
  %v68 = vunpack.c.l.b16 %v36
  %v69 = vunpack.c.l.b16 %v37
  %v70 = vunpack.c.l.b16 %v38
  %v71 = vunpack.c.l.b16 %v39
  %v72 = vunpack.c.l.b16 %v40
  %v73 = vunpack.c.l.b16 %v41
  %v74 = vunpack.c.l.b16 %v42
  %v75 = vunpack.c.l.b16 %v43
  %v76 = vunpack.c.l.b16 %v44
  %v77 = vunpack.c.l.b16 %v45
  %v78 = vunpack.c.l.b16 %v46
  %v79 = vunpack.c.l.b16 %v47
  %v80 = vunpack.c.l.b16 %v48
  %v81 = vunpack.c.l.b16 %v49
  %v82 = vpack.c.b16 %v67, %v66
  %v83 = vpack.c.b16 %v69, %v68
  %v84 = vpack.c.b16 %v71, %v70
  %v85 = vpack.c.b16 %v73, %v72
  %v86 = vpack.c.b16 %v75, %v74
  %v87 = vpack.c.b16 %v77, %v76
  %v88 = vpack.c.b16 %v79, %v78
  %v89 = vpack.c.b16 %v81, %v80
  %v114 = vunpack.c.l.b16 %v18
  %v115 = vunpack.c.l.b16 %v19
  %v116 = vunpack.c.l.b16 %v20
  %v117 = vunpack.c.l.b16 %v21
  %v118 = vunpack.c.l.b16 %v22
  %v119 = vunpack.c.l.b16 %v23
  %v120 = vunpack.c.l.b16 %v24
  %v121 = vunpack.c.l.b16 %v25
  %v122 = vunpack.c.l.b16 %v26
  %v123 = vunpack.c.l.b16 %v27
  %v124 = vunpack.c.l.b16 %v28
  %v125 = vunpack.c.l.b16 %v29
  %v126 = vunpack.c.l.b16 %v30
  %v127 = vunpack.c.l.b16 %v31
  %v128 = vunpack.c.l.b16 %v32
  %v129 = vunpack.c.l.b16 %v33
  %v130 = vpack.c.b16 %v115, %v114
  %v131 = vpack.c.b16 %v117, %v116
  %v132 = vpack.c.b16 %v119, %v118
  %v133 = vpack.c.b16 %v121, %v120
  %v134 = vpack.c.b16 %v123, %v122
  %v135 = vpack.c.b16 %v125, %v124
  %v136 = vpack.c.b16 %v127, %v126
  %v137 = vpack.c.b16 %v129, %v128
  %146 = vmatprep.subr.bf16.mxu0 0
  %147 = vmatpush1.bf16.msra.mxu0 %v130
  %148 = vmatprep.subr.bf16.mxu0 0
  %149 = vmatpush1.bf16.msra.mxu0 %v131
  %150 = vmatprep.subr.bf16.mxu0 0
  %151 = vmatpush1.bf16.msra.mxu0 %v132
  %152 = vmatprep.subr.bf16.mxu0 0
  %153 = vmatpush1.bf16.msra.mxu0 %v133
  %154 = vmatprep.subr.bf16.mxu0 0
  %155 = vmatpush1.bf16.msra.mxu0 %v134
  %156 = vmatprep.subr.bf16.mxu0 0
  %157 = vmatpush1.bf16.msra.mxu0 %v135
  %158 = vmatprep.subr.bf16.mxu0 0
  %159 = vmatpush1.bf16.msra.mxu0 %v136
  %160 = vmatprep.subr.bf16.mxu0 0
  %161 = vmatpush1.bf16.msra.mxu0 %v137
  %162 = vmatprep.subr.bf16.mxu0 0
  %163 = vmatpush1.bf16.msra.mxu0 0
  %164 = vmatprep.subr.bf16.mxu0 0
  %165 = vmatpush1.bf16.msra.mxu0 0
  %166 = vmatprep.subr.bf16.mxu0 0
  %167 = vmatpush1.bf16.msra.mxu0 0
  %168 = vmatprep.subr.bf16.mxu0 0
  %169 = vmatpush1.bf16.msra.mxu0 0
  %170 = vmatprep.subr.bf16.mxu0 0
  %171 = vmatpush1.bf16.msra.mxu0 0
  %172 = vmatprep.subr.bf16.mxu0 0
  %173 = vmatpush1.bf16.msra.mxu0 0
  %174 = vmatprep.subr.bf16.mxu0 0
  %175 = vmatpush1.bf16.msra.mxu0 0
  %176 = vmatprep.subr.bf16.mxu0 0
  %177 = vmatpush1.bf16.msra.mxu0 0
  %178 = vmatprep.mubr.bf16.mxu0 0
  %179 = vmatmul.mubr.bf16.gmra.mrb[0].mxu0 %v82
  %v180 = vpop.f32.mrb[0].mxu0
  %v181 = vadd.f32 0.0, %v180
  %v182 = vpop.f32.mrb[0].mxu0
  %v183 = vpop.f32.mrb[0].mxu0
  %v184 = vadd.f32 0.0, %v183
  %v185 = vpop.f32.mrb[0].mxu0
  %186 = vmatprep.mubr.bf16.mxu0 0
  %187 = vmatmul.mubr.bf16.gmra.mrb[0].mxu0 %v83
  %v188 = vpop.f32.mrb[0].mxu0
  %v189 = vadd.f32 0.0, %v188
  %v190 = vpop.f32.mrb[0].mxu0
  %v191 = vpop.f32.mrb[0].mxu0
  %v192 = vadd.f32 0.0, %v191
  %v193 = vpop.f32.mrb[0].mxu0
  %194 = vmatprep.mubr.bf16.mxu0 0
  %195 = vmatmul.mubr.bf16.gmra.mrb[0].mxu0 %v84
  %v196 = vpop.f32.mrb[0].mxu0
  %v197 = vadd.f32 0.0, %v196
  %v198 = vpop.f32.mrb[0].mxu0
  %v199 = vpop.f32.mrb[0].mxu0
  %v200 = vadd.f32 0.0, %v199
  %v201 = vpop.f32.mrb[0].mxu0
  %202 = vmatprep.mubr.bf16.mxu0 0
  %203 = vmatmul.mubr.bf16.gmra.mrb[0].mxu0 %v85
  %v204 = vpop.f32.mrb[0].mxu0
  %v205 = vadd.f32 0.0, %v204
  %v206 = vpop.f32.mrb[0].mxu0
  %v207 = vpop.f32.mrb[0].mxu0
  %v208 = vadd.f32 0.0, %v207
  %v209 = vpop.f32.mrb[0].mxu0
  %210 = vmatprep.mubr.bf16.mxu0 0
  %211 = vmatmul.mubr.bf16.gmra.mrb[0].mxu0 %v86
  %v212 = vpop.f32.mrb[0].mxu0
  %v213 = vadd.f32 0.0, %v212
  %v214 = vpop.f32.mrb[0].mxu0
  %v215 = vpop.f32.mrb[0].mxu0
  %v216 = vadd.f32 0.0, %v215
  %v217 = vpop.f32.mrb[0].mxu0
  %218 = vmatprep.mubr.bf16.mxu0 0
  %219 = vmatmul.mubr.bf16.gmra.mrb[0].mxu0 %v87
  %v220 = vpop.f32.mrb[0].mxu0
  %v221 = vadd.f32 0.0, %v220
  %v222 = vpop.f32.mrb[0].mxu0
  %v223 = vpop.f32.mrb[0].mxu0
  %v224 = vadd.f32 0.0, %v223
  %v225 = vpop.f32.mrb[0].mxu0
  %226 = vmatprep.mubr.bf16.mxu0 0
  %227 = vmatmul.mubr.bf16.gmra.mrb[0].mxu0 %v88
  %v228 = vpop.f32.mrb[0].mxu0
  %v229 = vadd.f32 0.0, %v228
  %v230 = vpop.f32.mrb[0].mxu0
  %v231 = vpop.f32.mrb[0].mxu0
  %v232 = vadd.f32 0.0, %v231
  %v233 = vpop.f32.mrb[0].mxu0
  %234 = vmatprep.mubr.bf16.mxu0 0
  %235 = vmatmul.mubr.bf16.gmra.mrb[0].mxu0 %v89
  %v236 = vpop.f32.mrb[0].mxu0
  %v237 = vadd.f32 0.0, %v236
  %v238 = vpop.f32.mrb[0].mxu0
  %v239 = vpop.f32.mrb[0].mxu0
  %v240 = vadd.f32 0.0, %v239
  %v241 = vpop.f32.mrb[0].mxu0
  %242 = vdwg.mxu0
  %p243 = scmp.eq.s32.totalorder 0, 0
  // Predicated region
  $region18: #{gcn_feature_extraction_forward.2} parent=0 // pred_check
    %p244 = pneg %p243
  $region19: #{gcn_feature_extraction_forward.2} parent=0 // pred_check_branch
    %246 = sbr.rel (%p244) target = $region21
  $region20: #{gcn_feature_extraction_forward.2} parent=0 // pred_region
    %247 = vst [vmem:[#allocation2] sm:$0xff] %v181
    %248 = vst [vmem:[#allocation2 + $0x8] sm:$0xff] %v184
    %249 = vst [vmem:[#allocation2 + $0x10] sm:$0xff] %v189
    %250 = vst [vmem:[#allocation2 + $0x18] sm:$0xff] %v192
    %251 = vst [vmem:[#allocation2 + $0x20] sm:$0xff] %v197
    %252 = vst [vmem:[#allocation2 + $0x28] sm:$0xff] %v200
    %253 = vst [vmem:[#allocation2 + $0x30] sm:$0xff] %v205
    %254 = vst [vmem:[#allocation2 + $0x38] sm:$0xff] %v208
    %255 = vst [vmem:[#allocation2 + $0x40] sm:$0xff] %v213
    %256 = vst [vmem:[#allocation2 + $0x48] sm:$0xff] %v216
    %257 = vst [vmem:[#allocation2 + $0x50] sm:$0xff] %v221
    %258 = vst [vmem:[#allocation2 + $0x58] sm:$0xff] %v224
    %259 = vst [vmem:[#allocation2 + $0x60] sm:$0xff] %v229
    %260 = vst [vmem:[#allocation2 + $0x68] sm:$0xff] %v232
    %261 = vst [vmem:[#allocation2 + $0x70] sm:$0xff] %v237
    %262 = vst [vmem:[#allocation2 + $0x78] sm:$0xff] %v240
  $region21: #{gcn_feature_extraction_forward.2} parent=0 // pred_fallthru
    _
  %p263 = scmp.gt.s32.totalorder 0, 0
  // Predicated region
  $region22: #{gcn_feature_extraction_forward.2} parent=0 // pred_check
    %p264 = pneg %p263
  $region23: #{gcn_feature_extraction_forward.2} parent=0 // pred_check_branch
    %266 = sbr.rel (%p264) target = $region25
  $region24: #{gcn_feature_extraction_forward.2} parent=0 // pred_region
    %v267 = vld [vmem:[#allocation2] sm:$0xff]
    %v268 = vld [vmem:[#allocation2 + $0x8] sm:$0xff]
    %v269 = vld [vmem:[#allocation2 + $0x10] sm:$0xff]
    %v270 = vld [vmem:[#allocation2 + $0x18] sm:$0xff]
    %v271 = vld [vmem:[#allocation2 + $0x20] sm:$0xff]
    %v272 = vld [vmem:[#allocation2 + $0x28] sm:$0xff]
    %v273 = vld [vmem:[#allocation2 + $0x30] sm:$0xff]
    %v274 = vld [vmem:[#allocation2 + $0x38] sm:$0xff]
    %v275 = vld [vmem:[#allocation2 + $0x40] sm:$0xff]
    %v276 = vld [vmem:[#allocation2 + $0x48] sm:$0xff]
    %v277 = vld [vmem:[#allocation2 + $0x50] sm:$0xff]
    %v278 = vld [vmem:[#allocation2 + $0x58] sm:$0xff]
    %v279 = vld [vmem:[#allocation2 + $0x60] sm:$0xff]
    %v280 = vld [vmem:[#allocation2 + $0x68] sm:$0xff]
    %v281 = vld [vmem:[#allocation2 + $0x70] sm:$0xff]
    %v282 = vld [vmem:[#allocation2 + $0x78] sm:$0xff]
    %v283 = vadd.f32 %v267, %v181
    %v284 = vadd.f32 %v268, %v184
    %v285 = vadd.f32 %v269, %v189
    %v286 = vadd.f32 %v270, %v192
    %v287 = vadd.f32 %v271, %v197
    %v288 = vadd.f32 %v272, %v200
    %v289 = vadd.f32 %v273, %v205
    %v290 = vadd.f32 %v274, %v208
    %v291 = vadd.f32 %v275, %v213
    %v292 = vadd.f32 %v276, %v216
    %v293 = vadd.f32 %v277, %v221
    %v294 = vadd.f32 %v278, %v224
    %v295 = vadd.f32 %v279, %v229
    %v296 = vadd.f32 %v280, %v232
    %v297 = vadd.f32 %v281, %v237
    %v298 = vadd.f32 %v282, %v240
    %299 = vst [vmem:[#allocation2] sm:$0xff] %v283
    %300 = vst [vmem:[#allocation2 + $0x8] sm:$0xff] %v284
    %301 = vst [vmem:[#allocation2 + $0x10] sm:$0xff] %v285
    %302 = vst [vmem:[#allocation2 + $0x18] sm:$0xff] %v286
    %303 = vst [vmem:[#allocation2 + $0x20] sm:$0xff] %v287
    %304 = vst [vmem:[#allocation2 + $0x28] sm:$0xff] %v288
    %305 = vst [vmem:[#allocation2 + $0x30] sm:$0xff] %v289
    %306 = vst [vmem:[#allocation2 + $0x38] sm:$0xff] %v290
    %307 = vst [vmem:[#allocation2 + $0x40] sm:$0xff] %v291
    %308 = vst [vmem:[#allocation2 + $0x48] sm:$0xff] %v292
    %309 = vst [vmem:[#allocation2 + $0x50] sm:$0xff] %v293
    %310 = vst [vmem:[#allocation2 + $0x58] sm:$0xff] %v294
    %311 = vst [vmem:[#allocation2 + $0x60] sm:$0xff] %v295
    %312 = vst [vmem:[#allocation2 + $0x68] sm:$0xff] %v296
    %313 = vst [vmem:[#allocation2 + $0x70] sm:$0xff] %v297
    %314 = vst [vmem:[#allocation2 + $0x78] sm:$0xff] %v298
  $region25: #{gcn_feature_extraction_forward.2} parent=0 // pred_fallthru
    _
  // Predicated region
  $region26: #{gcn_feature_extraction_forward.2} parent=0 // pred_check
    %p315 = pneg %p243
  $region27: #{gcn_feature_extraction_forward.2} parent=0 // pred_check_branch
    %317 = sbr.rel (%p315) target = $region29
  $region28: #{gcn_feature_extraction_forward.2} parent=0 // pred_region
    %v318 = vld [vmem:[#allocation2] sm:$0xff]
    %v319 = vld [vmem:[#allocation2 + $0x8] sm:$0xff]
    %v320 = vld [vmem:[#allocation2 + $0x10] sm:$0xff]
    %v321 = vld [vmem:[#allocation2 + $0x18] sm:$0xff]
    %v322 = vld [vmem:[#allocation2 + $0x20] sm:$0xff]
    %v323 = vld [vmem:[#allocation2 + $0x28] sm:$0xff]
    %v324 = vld [vmem:[#allocation2 + $0x30] sm:$0xff]
    %v325 = vld [vmem:[#allocation2 + $0x38] sm:$0xff]
    %v326 = vld [vmem:[#allocation2 + $0x40] sm:$0xff]
    %v327 = vld [vmem:[#allocation2 + $0x48] sm:$0xff]
    %v328 = vld [vmem:[#allocation2 + $0x50] sm:$0xff]
    %v329 = vld [vmem:[#allocation2 + $0x58] sm:$0xff]
    %v330 = vld [vmem:[#allocation2 + $0x60] sm:$0xff]
    %v331 = vld [vmem:[#allocation2 + $0x68] sm:$0xff]
    %v332 = vld [vmem:[#allocation2 + $0x70] sm:$0xff]
    %v333 = vld [vmem:[#allocation2 + $0x78] sm:$0xff]
    %v334 = vpack.c.bf16 %v319, %v318
    %v335 = vpack.c.bf16 %v321, %v320
    %v336 = vpack.c.bf16 %v323, %v322
    %v337 = vpack.c.bf16 %v325, %v324
    %v338 = vpack.c.bf16 %v327, %v326
    %v339 = vpack.c.bf16 %v329, %v328
    %v340 = vpack.c.bf16 %v331, %v330
    %v341 = vpack.c.bf16 %v333, %v332
    %v342 = vld [vmem:[%s2] sm:$0xf]
    %v343 = vld [vmem:[%s2 + $0x4] sm:$0xf]
    %v344 = vld [vmem:[%s2 + $0x8] sm:$0xf]
    %v345 = vld [vmem:[%s2 + $0xc] sm:$0xf]
    %v346 = vld [vmem:[%s2 + $0x10] sm:$0xf]
    %v347 = vld [vmem:[%s2 + $0x14] sm:$0xf]
    %v348 = vld [vmem:[%s2 + $0x18] sm:$0xf]
    %v349 = vld [vmem:[%s2 + $0x1c] sm:$0xf]
    %v350 = vld [vmem:[%s2 + $0x20] sm:$0xf]
    %v351 = vld [vmem:[%s2 + $0x24] sm:$0xf]
    %v352 = vld [vmem:[%s2 + $0x28] sm:$0xf]
    %v353 = vld [vmem:[%s2 + $0x2c] sm:$0xf]
    %v354 = vld [vmem:[%s2 + $0x30] sm:$0xf]
    %v355 = vld [vmem:[%s2 + $0x34] sm:$0xf]
    %v356 = vld [vmem:[%s2 + $0x38] sm:$0xf]
    %v357 = vld [vmem:[%s2 + $0x3c] sm:$0xf]
    %v358 = vld [vmem:[%s3] sm:$0x1]
    %v360 = vlaneseq
    %v361 = vshrl.u32 %v360, 7
    %v362 = vsub.s32 0, %v361
    %v363 = vrot.slane %v358, %v362
    %v381 = vunpack.c.l.b16 %v342
    %v382 = vunpack.c.l.b16 %v343
    %v383 = vunpack.c.l.b16 %v344
    %v384 = vunpack.c.l.b16 %v345
    %v385 = vunpack.c.l.b16 %v346
    %v386 = vunpack.c.l.b16 %v347
    %v387 = vunpack.c.l.b16 %v348
    %v388 = vunpack.c.l.b16 %v349
    %v389 = vunpack.c.l.b16 %v350
    %v390 = vunpack.c.l.b16 %v351
    %v391 = vunpack.c.l.b16 %v352
    %v392 = vunpack.c.l.b16 %v353
    %v393 = vunpack.c.l.b16 %v354
    %v394 = vunpack.c.l.b16 %v355
    %v395 = vunpack.c.l.b16 %v356
    %v396 = vunpack.c.l.b16 %v357
    %v397 = vpack.c.b16 %v382, %v381
    %v398 = vpack.c.b16 %v384, %v383
    %v399 = vpack.c.b16 %v386, %v385
    %v400 = vpack.c.b16 %v388, %v387
    %v401 = vpack.c.b16 %v390, %v389
    %v402 = vpack.c.b16 %v392, %v391
    %v403 = vpack.c.b16 %v394, %v393
    %v404 = vpack.c.b16 %v396, %v395
    %413 = vmatprep.subr.bf16.mxu0 0
    %414 = vmatpush1.bf16.msra.mxu0 %v397
    %415 = vmatprep.subr.bf16.mxu0 0
    %416 = vmatpush1.bf16.msra.mxu0 %v398
    %417 = vmatprep.subr.bf16.mxu0 0
    %418 = vmatpush1.bf16.msra.mxu0 %v399
    %419 = vmatprep.subr.bf16.mxu0 0
    %420 = vmatpush1.bf16.msra.mxu0 %v400
    %421 = vmatprep.subr.bf16.mxu0 0
    %422 = vmatpush1.bf16.msra.mxu0 %v401
    %423 = vmatprep.subr.bf16.mxu0 0
    %424 = vmatpush1.bf16.msra.mxu0 %v402
    %425 = vmatprep.subr.bf16.mxu0 0
    %426 = vmatpush1.bf16.msra.mxu0 %v403
    %427 = vmatprep.subr.bf16.mxu0 0
    %428 = vmatpush1.bf16.msra.mxu0 %v404
    %429 = vmatprep.subr.bf16.mxu0 0
    %430 = vmatpush1.bf16.msra.mxu0 0
    %431 = vmatprep.subr.bf16.mxu0 0
    %432 = vmatpush1.bf16.msra.mxu0 0
    %433 = vmatprep.subr.bf16.mxu0 0
    %434 = vmatpush1.bf16.msra.mxu0 0
    %435 = vmatprep.subr.bf16.mxu0 0
    %436 = vmatpush1.bf16.msra.mxu0 0
    %437 = vmatprep.subr.bf16.mxu0 0
    %438 = vmatpush1.bf16.msra.mxu0 0
    %439 = vmatprep.subr.bf16.mxu0 0
    %440 = vmatpush1.bf16.msra.mxu0 0
    %441 = vmatprep.subr.bf16.mxu0 0
    %442 = vmatpush1.bf16.msra.mxu0 0
    %443 = vmatprep.subr.bf16.mxu0 0
    %444 = vmatpush1.bf16.msra.mxu0 0
    %445 = vmatprep.mubr.bf16.mxu0 0
    %446 = vmatmul.mubr.bf16.gmra.mrb[0].mxu0 %v334
    %v447 = vpop.f32.mrb[0].mxu0
    %v448 = vadd.f32 %v363, %v447
    %v449 = vpop.f32.mrb[0].mxu0
    %v450 = vpop.f32.mrb[0].mxu0
    %v451 = vadd.f32 %v363, %v450
    %v452 = vpop.f32.mrb[0].mxu0
    %453 = vmatprep.mubr.bf16.mxu0 0
    %454 = vmatmul.mubr.bf16.gmra.mrb[0].mxu0 %v335
    %v455 = vpop.f32.mrb[0].mxu0
    %v456 = vadd.f32 %v363, %v455
    %v457 = vpop.f32.mrb[0].mxu0
    %v458 = vpop.f32.mrb[0].mxu0
    %v459 = vadd.f32 %v363, %v458
    %v460 = vpop.f32.mrb[0].mxu0
    %461 = vmatprep.mubr.bf16.mxu0 0
    %462 = vmatmul.mubr.bf16.gmra.mrb[0].mxu0 %v336
    %v463 = vpop.f32.mrb[0].mxu0
    %v464 = vadd.f32 %v363, %v463
    %v465 = vpop.f32.mrb[0].mxu0
    %v466 = vpop.f32.mrb[0].mxu0
    %v467 = vadd.f32 %v363, %v466
    %v468 = vpop.f32.mrb[0].mxu0
    %469 = vmatprep.mubr.bf16.mxu0 0
    %470 = vmatmul.mubr.bf16.gmra.mrb[0].mxu0 %v337
    %v471 = vpop.f32.mrb[0].mxu0
    %v472 = vadd.f32 %v363, %v471
    %v473 = vpop.f32.mrb[0].mxu0
    %v474 = vpop.f32.mrb[0].mxu0
    %v475 = vadd.f32 %v363, %v474
    %v476 = vpop.f32.mrb[0].mxu0
    %477 = vmatprep.mubr.bf16.mxu0 0
    %478 = vmatmul.mubr.bf16.gmra.mrb[0].mxu0 %v338
    %v479 = vpop.f32.mrb[0].mxu0
    %v480 = vadd.f32 %v363, %v479
    %v481 = vpop.f32.mrb[0].mxu0
    %v482 = vpop.f32.mrb[0].mxu0
    %v483 = vadd.f32 %v363, %v482
    %v484 = vpop.f32.mrb[0].mxu0
    %485 = vmatprep.mubr.bf16.mxu0 0
    %486 = vmatmul.mubr.bf16.gmra.mrb[0].mxu0 %v339
    %v487 = vpop.f32.mrb[0].mxu0
    %v488 = vadd.f32 %v363, %v487
    %v489 = vpop.f32.mrb[0].mxu0
    %v490 = vpop.f32.mrb[0].mxu0
    %v491 = vadd.f32 %v363, %v490
    %v492 = vpop.f32.mrb[0].mxu0
    %493 = vmatprep.mubr.bf16.mxu0 0
    %494 = vmatmul.mubr.bf16.gmra.mrb[0].mxu0 %v340
    %v495 = vpop.f32.mrb[0].mxu0
    %v496 = vadd.f32 %v363, %v495
    %v497 = vpop.f32.mrb[0].mxu0
    %v498 = vpop.f32.mrb[0].mxu0
    %v499 = vadd.f32 %v363, %v498
    %v500 = vpop.f32.mrb[0].mxu0
    %501 = vmatprep.mubr.bf16.mxu0 0
    %502 = vmatmul.mubr.bf16.gmra.mrb[0].mxu0 %v341
    %v503 = vpop.f32.mrb[0].mxu0
    %v504 = vadd.f32 %v363, %v503
    %v505 = vpop.f32.mrb[0].mxu0
    %v506 = vpop.f32.mrb[0].mxu0
    %v507 = vadd.f32 %v363, %v506
    %v508 = vpop.f32.mrb[0].mxu0
    %509 = vdwg.mxu0
    %v510 = vmax.f32 %v448, 0.0
    %v511 = vmax.f32 %v451, 0.0
    %v512 = vmax.f32 %v456, 0.0
    %v513 = vmax.f32 %v459, 0.0
    %v514 = vmax.f32 %v464, 0.0
    %v515 = vmax.f32 %v467, 0.0
    %v516 = vmax.f32 %v472, 0.0
    %v517 = vmax.f32 %v475, 0.0
    %v518 = vmax.f32 %v480, 0.0
    %v519 = vmax.f32 %v483, 0.0
    %v520 = vmax.f32 %v488, 0.0
    %v521 = vmax.f32 %v491, 0.0
    %v522 = vmax.f32 %v496, 0.0
    %v523 = vmax.f32 %v499, 0.0
    %v524 = vmax.f32 %v504, 0.0
    %v525 = vmax.f32 %v507, 0.0
    %v526 = vpack.c.bf16 %v511, %v510
    %v527 = vpack.c.bf16 %v513, %v512
    %v528 = vpack.c.bf16 %v515, %v514
    %v529 = vpack.c.bf16 %v517, %v516
    %v530 = vpack.c.bf16 %v519, %v518
    %v531 = vpack.c.bf16 %v521, %v520
    %v532 = vpack.c.bf16 %v523, %v522
    %v533 = vpack.c.bf16 %v525, %v524
    %v542 = vunpack.c.l.b16 %v526
    %v543 = vunpack.c.h.b16 %v526
    %v544 = vunpack.c.l.b16 %v527
    %v545 = vunpack.c.h.b16 %v527
    %v546 = vunpack.c.l.b16 %v528
    %v547 = vunpack.c.h.b16 %v528
    %v548 = vunpack.c.l.b16 %v529
    %v549 = vunpack.c.h.b16 %v529
    %v550 = vunpack.c.l.b16 %v530
    %v551 = vunpack.c.h.b16 %v530
    %v552 = vunpack.c.l.b16 %v531
    %v553 = vunpack.c.h.b16 %v531
    %v554 = vunpack.c.l.b16 %v532
    %v555 = vunpack.c.h.b16 %v532
    %v556 = vunpack.c.l.b16 %v533
    %v557 = vunpack.c.h.b16 %v533
    %v558 = vpack.c.b16 %v542, %v542
    %v559 = vpack.c.b16 %v543, %v543
    %v560 = vpack.c.b16 %v544, %v544
    %v561 = vpack.c.b16 %v545, %v545
    %v562 = vpack.c.b16 %v546, %v546
    %v563 = vpack.c.b16 %v547, %v547
    %v564 = vpack.c.b16 %v548, %v548
    %v565 = vpack.c.b16 %v549, %v549
    %v566 = vpack.c.b16 %v550, %v550
    %v567 = vpack.c.b16 %v551, %v551
    %v568 = vpack.c.b16 %v552, %v552
    %v569 = vpack.c.b16 %v553, %v553
    %v570 = vpack.c.b16 %v554, %v554
    %v571 = vpack.c.b16 %v555, %v555
    %v572 = vpack.c.b16 %v556, %v556
    %v573 = vpack.c.b16 %v557, %v557
    %590 = vst [vmem:[%s4] sm:$0xf] %v558
    %591 = vst [vmem:[%s4 + $0x4] sm:$0xf] %v559
    %592 = vst [vmem:[%s4 + $0x8] sm:$0xf] %v560
    %593 = vst [vmem:[%s4 + $0xc] sm:$0xf] %v561
    %594 = vst [vmem:[%s4 + $0x10] sm:$0xf] %v562
    %595 = vst [vmem:[%s4 + $0x14] sm:$0xf] %v563
    %596 = vst [vmem:[%s4 + $0x18] sm:$0xf] %v564
    %597 = vst [vmem:[%s4 + $0x1c] sm:$0xf] %v565
    %598 = vst [vmem:[%s4 + $0x20] sm:$0xf] %v566
    %599 = vst [vmem:[%s4 + $0x24] sm:$0xf] %v567
    %600 = vst [vmem:[%s4 + $0x28] sm:$0xf] %v568
    %601 = vst [vmem:[%s4 + $0x2c] sm:$0xf] %v569
    %602 = vst [vmem:[%s4 + $0x30] sm:$0xf] %v570
    %603 = vst [vmem:[%s4 + $0x34] sm:$0xf] %v571
    %604 = vst [vmem:[%s4 + $0x38] sm:$0xf] %v572
    %605 = vst [vmem:[%s4 + $0x3c] sm:$0xf] %v573
  $region29: #{gcn_feature_extraction_forward.2} parent=0 // pred_fallthru
    _
  // Predicated region
  $region30: #{gcn_feature_extraction_forward.2} parent=0 // pred_check
    _
  $region31: #{gcn_feature_extraction_forward.2} parent=0 // pred_check_branch
    %607 = sbr.rel (0) target = $region33
  $region32: #{gcn_feature_extraction_forward.2} parent=0 // pred_region
    _
  $region33: #{gcn_feature_extraction_forward.2} parent=0 // pred_fallthru
    _
  // Predicated region
  $region34: #{gcn_feature_extraction_forward.2} parent=0 // pred_check
    _
  $region35: #{gcn_feature_extraction_forward.2} parent=0 // pred_check_branch
    %609 = sbr.rel (0) target = $region37
  $region36: #{gcn_feature_extraction_forward.2} parent=0 // pred_region
    _
  $region37: #{gcn_feature_extraction_forward.2} parent=0 // pred_fallthru
    _

// kernel: gcn_feature_extraction_forward.3
$region0: #{gcn_feature_extraction_forward.3}
  #allocation0 [shape = 'u32[]', space=smem, size = 0x4, offset = 0x4, fixed_abs, tag = 'smem constant byte address 0x4 - core index']
  #allocation1 [shape = 'u32[144,128]{1,0:T(1,128)}', space=vmem, size = 0x12000, scoped, tag = 'internal scratch']
  #allocation2 [shape = 'f32[128,128]{1,0:T(8,128)}', space=vmem, size = 0x10000, scoped, tag = 'scratch operand']
  %s0 = inlined_call_operand.vmem [shape: bf16[128,128], index: 0, kind: input, shape index: {}]
  %s1 = inlined_call_operand.vmem [shape: bf16[128,128], index: 1, kind: input, shape index: {}]
  %s2 = inlined_call_operand.vmem [shape: bf16[128,128], index: 2, kind: input, shape index: {}]
  %s3 = inlined_call_operand.vmem [shape: f32[1,128], index: 3, kind: input, shape index: {}]
  %s4 = inlined_call_operand.vmem [shape: f32[128,128], index: 4, kind: output, shape index: {}]
  %s5 = sld [smem:[#allocation0]]
  $region38: #{gcn_feature_extraction_forward.3} parent=0
    _
  %s7 = ssub.s32 1, %s5
  %s8 = scalar_select 0, %s7, %s5
  // Predicated region
  $region2: #{gcn_feature_extraction_forward.3} parent=0 // pred_check
    _
  $region3: #{gcn_feature_extraction_forward.3} parent=0 // pred_check_branch
    %10 = sbr.rel (0) target = $region5
  $region4: #{gcn_feature_extraction_forward.3} parent=0 // pred_region
    _
  $region5: #{gcn_feature_extraction_forward.3} parent=0 // pred_fallthru
    _
  // Predicated region
  $region6: #{gcn_feature_extraction_forward.3} parent=0 // pred_check
    _
  $region7: #{gcn_feature_extraction_forward.3} parent=0 // pred_check_branch
    %12 = sbr.rel (0) target = $region9
  $region8: #{gcn_feature_extraction_forward.3} parent=0 // pred_region
    _
  $region9: #{gcn_feature_extraction_forward.3} parent=0 // pred_fallthru
    _
  // Predicated region
  $region10: #{gcn_feature_extraction_forward.3} parent=0 // pred_check
    _
  $region11: #{gcn_feature_extraction_forward.3} parent=0 // pred_check_branch
    %14 = sbr.rel (0) target = $region13
  $region12: #{gcn_feature_extraction_forward.3} parent=0 // pred_region
    _
  $region13: #{gcn_feature_extraction_forward.3} parent=0 // pred_fallthru
    _
  // Predicated region
  $region14: #{gcn_feature_extraction_forward.3} parent=0 // pred_check
    _
  $region15: #{gcn_feature_extraction_forward.3} parent=0 // pred_check_branch
    %16 = sbr.rel (0) target = $region17
  $region16: #{gcn_feature_extraction_forward.3} parent=0 // pred_region
    _
  $region17: #{gcn_feature_extraction_forward.3} parent=0 // pred_fallthru
    _
  %v18 = vld [vmem:[%s1] sm:$0xf]
  %v19 = vld [vmem:[%s1 + $0x4] sm:$0xf]
  %v20 = vld [vmem:[%s1 + $0x8] sm:$0xf]
  %v21 = vld [vmem:[%s1 + $0xc] sm:$0xf]
  %v22 = vld [vmem:[%s1 + $0x10] sm:$0xf]
  %v23 = vld [vmem:[%s1 + $0x14] sm:$0xf]
  %v24 = vld [vmem:[%s1 + $0x18] sm:$0xf]
  %v25 = vld [vmem:[%s1 + $0x1c] sm:$0xf]
  %v26 = vld [vmem:[%s1 + $0x20] sm:$0xf]
  %v27 = vld [vmem:[%s1 + $0x24] sm:$0xf]
  %v28 = vld [vmem:[%s1 + $0x28] sm:$0xf]
  %v29 = vld [vmem:[%s1 + $0x2c] sm:$0xf]
  %v30 = vld [vmem:[%s1 + $0x30] sm:$0xf]
  %v31 = vld [vmem:[%s1 + $0x34] sm:$0xf]
  %v32 = vld [vmem:[%s1 + $0x38] sm:$0xf]
  %v33 = vld [vmem:[%s1 + $0x3c] sm:$0xf]
  %v34 = vld [vmem:[%s0] sm:$0xf]
  %v35 = vld [vmem:[%s0 + $0x4] sm:$0xf]
  %v36 = vld [vmem:[%s0 + $0x8] sm:$0xf]
  %v37 = vld [vmem:[%s0 + $0xc] sm:$0xf]
  %v38 = vld [vmem:[%s0 + $0x10] sm:$0xf]
  %v39 = vld [vmem:[%s0 + $0x14] sm:$0xf]
  %v40 = vld [vmem:[%s0 + $0x18] sm:$0xf]
  %v41 = vld [vmem:[%s0 + $0x1c] sm:$0xf]
  %v42 = vld [vmem:[%s0 + $0x20] sm:$0xf]
  %v43 = vld [vmem:[%s0 + $0x24] sm:$0xf]
  %v44 = vld [vmem:[%s0 + $0x28] sm:$0xf]
  %v45 = vld [vmem:[%s0 + $0x2c] sm:$0xf]
  %v46 = vld [vmem:[%s0 + $0x30] sm:$0xf]
  %v47 = vld [vmem:[%s0 + $0x34] sm:$0xf]
  %v48 = vld [vmem:[%s0 + $0x38] sm:$0xf]
  %v49 = vld [vmem:[%s0 + $0x3c] sm:$0xf]
  %v66 = vunpack.c.l.b16 %v34
  %v67 = vunpack.c.l.b16 %v35
  %v68 = vunpack.c.l.b16 %v36
  %v69 = vunpack.c.l.b16 %v37
  %v70 = vunpack.c.l.b16 %v38
  %v71 = vunpack.c.l.b16 %v39
  %v72 = vunpack.c.l.b16 %v40
  %v73 = vunpack.c.l.b16 %v41
  %v74 = vunpack.c.l.b16 %v42
  %v75 = vunpack.c.l.b16 %v43
  %v76 = vunpack.c.l.b16 %v44
  %v77 = vunpack.c.l.b16 %v45
  %v78 = vunpack.c.l.b16 %v46
  %v79 = vunpack.c.l.b16 %v47
  %v80 = vunpack.c.l.b16 %v48
  %v81 = vunpack.c.l.b16 %v49
  %v82 = vpack.c.b16 %v67, %v66
  %v83 = vpack.c.b16 %v69, %v68
  %v84 = vpack.c.b16 %v71, %v70
  %v85 = vpack.c.b16 %v73, %v72
  %v86 = vpack.c.b16 %v75, %v74
  %v87 = vpack.c.b16 %v77, %v76
  %v88 = vpack.c.b16 %v79, %v78
  %v89 = vpack.c.b16 %v81, %v80
  %v114 = vunpack.c.l.b16 %v18
  %v115 = vunpack.c.l.b16 %v19
  %v116 = vunpack.c.l.b16 %v20
  %v117 = vunpack.c.l.b16 %v21
  %v118 = vunpack.c.l.b16 %v22
  %v119 = vunpack.c.l.b16 %v23
  %v120 = vunpack.c.l.b16 %v24
  %v121 = vunpack.c.l.b16 %v25
  %v122 = vunpack.c.l.b16 %v26
  %v123 = vunpack.c.l.b16 %v27
  %v124 = vunpack.c.l.b16 %v28
  %v125 = vunpack.c.l.b16 %v29
  %v126 = vunpack.c.l.b16 %v30
  %v127 = vunpack.c.l.b16 %v31
  %v128 = vunpack.c.l.b16 %v32
  %v129 = vunpack.c.l.b16 %v33
  %v130 = vpack.c.b16 %v115, %v114
  %v131 = vpack.c.b16 %v117, %v116
  %v132 = vpack.c.b16 %v119, %v118
  %v133 = vpack.c.b16 %v121, %v120
  %v134 = vpack.c.b16 %v123, %v122
  %v135 = vpack.c.b16 %v125, %v124
  %v136 = vpack.c.b16 %v127, %v126
  %v137 = vpack.c.b16 %v129, %v128
  %146 = vmatprep.subr.bf16.mxu0 0
  %147 = vmatpush1.bf16.msra.mxu0 %v130
  %148 = vmatprep.subr.bf16.mxu0 0
  %149 = vmatpush1.bf16.msra.mxu0 %v131
  %150 = vmatprep.subr.bf16.mxu0 0
  %151 = vmatpush1.bf16.msra.mxu0 %v132
  %152 = vmatprep.subr.bf16.mxu0 0
  %153 = vmatpush1.bf16.msra.mxu0 %v133
  %154 = vmatprep.subr.bf16.mxu0 0
  %155 = vmatpush1.bf16.msra.mxu0 %v134
  %156 = vmatprep.subr.bf16.mxu0 0
  %157 = vmatpush1.bf16.msra.mxu0 %v135
  %158 = vmatprep.subr.bf16.mxu0 0
  %159 = vmatpush1.bf16.msra.mxu0 %v136
  %160 = vmatprep.subr.bf16.mxu0 0
  %161 = vmatpush1.bf16.msra.mxu0 %v137
  %162 = vmatprep.subr.bf16.mxu0 0
  %163 = vmatpush1.bf16.msra.mxu0 0
  %164 = vmatprep.subr.bf16.mxu0 0
  %165 = vmatpush1.bf16.msra.mxu0 0
  %166 = vmatprep.subr.bf16.mxu0 0
  %167 = vmatpush1.bf16.msra.mxu0 0
  %168 = vmatprep.subr.bf16.mxu0 0
  %169 = vmatpush1.bf16.msra.mxu0 0
  %170 = vmatprep.subr.bf16.mxu0 0
  %171 = vmatpush1.bf16.msra.mxu0 0
  %172 = vmatprep.subr.bf16.mxu0 0
  %173 = vmatpush1.bf16.msra.mxu0 0
  %174 = vmatprep.subr.bf16.mxu0 0
  %175 = vmatpush1.bf16.msra.mxu0 0
  %176 = vmatprep.subr.bf16.mxu0 0
  %177 = vmatpush1.bf16.msra.mxu0 0
  %178 = vmatprep.mubr.bf16.mxu0 0
  %179 = vmatmul.mubr.bf16.gmra.mrb[0].mxu0 %v82
  %v180 = vpop.f32.mrb[0].mxu0
  %v181 = vadd.f32 0.0, %v180
  %v182 = vpop.f32.mrb[0].mxu0
  %v183 = vpop.f32.mrb[0].mxu0
  %v184 = vadd.f32 0.0, %v183
  %v185 = vpop.f32.mrb[0].mxu0
  %186 = vmatprep.mubr.bf16.mxu0 0
  %187 = vmatmul.mubr.bf16.gmra.mrb[0].mxu0 %v83
  %v188 = vpop.f32.mrb[0].mxu0
  %v189 = vadd.f32 0.0, %v188
  %v190 = vpop.f32.mrb[0].mxu0
  %v191 = vpop.f32.mrb[0].mxu0
  %v192 = vadd.f32 0.0, %v191
  %v193 = vpop.f32.mrb[0].mxu0
  %194 = vmatprep.mubr.bf16.mxu0 0
  %195 = vmatmul.mubr.bf16.gmra.mrb[0].mxu0 %v84
  %v196 = vpop.f32.mrb[0].mxu0
  %v197 = vadd.f32 0.0, %v196
  %v198 = vpop.f32.mrb[0].mxu0
  %v199 = vpop.f32.mrb[0].mxu0
  %v200 = vadd.f32 0.0, %v199
  %v201 = vpop.f32.mrb[0].mxu0
  %202 = vmatprep.mubr.bf16.mxu0 0
  %203 = vmatmul.mubr.bf16.gmra.mrb[0].mxu0 %v85
  %v204 = vpop.f32.mrb[0].mxu0
  %v205 = vadd.f32 0.0, %v204
  %v206 = vpop.f32.mrb[0].mxu0
  %v207 = vpop.f32.mrb[0].mxu0
  %v208 = vadd.f32 0.0, %v207
  %v209 = vpop.f32.mrb[0].mxu0
  %210 = vmatprep.mubr.bf16.mxu0 0
  %211 = vmatmul.mubr.bf16.gmra.mrb[0].mxu0 %v86
  %v212 = vpop.f32.mrb[0].mxu0
  %v213 = vadd.f32 0.0, %v212
  %v214 = vpop.f32.mrb[0].mxu0
  %v215 = vpop.f32.mrb[0].mxu0
  %v216 = vadd.f32 0.0, %v215
  %v217 = vpop.f32.mrb[0].mxu0
  %218 = vmatprep.mubr.bf16.mxu0 0
  %219 = vmatmul.mubr.bf16.gmra.mrb[0].mxu0 %v87
  %v220 = vpop.f32.mrb[0].mxu0
  %v221 = vadd.f32 0.0, %v220
  %v222 = vpop.f32.mrb[0].mxu0
  %v223 = vpop.f32.mrb[0].mxu0
  %v224 = vadd.f32 0.0, %v223
  %v225 = vpop.f32.mrb[0].mxu0
  %226 = vmatprep.mubr.bf16.mxu0 0
  %227 = vmatmul.mubr.bf16.gmra.mrb[0].mxu0 %v88
  %v228 = vpop.f32.mrb[0].mxu0
  %v229 = vadd.f32 0.0, %v228
  %v230 = vpop.f32.mrb[0].mxu0
  %v231 = vpop.f32.mrb[0].mxu0
  %v232 = vadd.f32 0.0, %v231
  %v233 = vpop.f32.mrb[0].mxu0
  %234 = vmatprep.mubr.bf16.mxu0 0
  %235 = vmatmul.mubr.bf16.gmra.mrb[0].mxu0 %v89
  %v236 = vpop.f32.mrb[0].mxu0
  %v237 = vadd.f32 0.0, %v236
  %v238 = vpop.f32.mrb[0].mxu0
  %v239 = vpop.f32.mrb[0].mxu0
  %v240 = vadd.f32 0.0, %v239
  %v241 = vpop.f32.mrb[0].mxu0
  %242 = vdwg.mxu0
  %p243 = scmp.eq.s32.totalorder 0, 0
  // Predicated region
  $region18: #{gcn_feature_extraction_forward.3} parent=0 // pred_check
    %p244 = pneg %p243
  $region19: #{gcn_feature_extraction_forward.3} parent=0 // pred_check_branch
    %246 = sbr.rel (%p244) target = $region21
  $region20: #{gcn_feature_extraction_forward.3} parent=0 // pred_region
    %247 = vst [vmem:[#allocation2] sm:$0xff] %v181
    %248 = vst [vmem:[#allocation2 + $0x8] sm:$0xff] %v184
    %249 = vst [vmem:[#allocation2 + $0x10] sm:$0xff] %v189
    %250 = vst [vmem:[#allocation2 + $0x18] sm:$0xff] %v192
    %251 = vst [vmem:[#allocation2 + $0x20] sm:$0xff] %v197
    %252 = vst [vmem:[#allocation2 + $0x28] sm:$0xff] %v200
    %253 = vst [vmem:[#allocation2 + $0x30] sm:$0xff] %v205
    %254 = vst [vmem:[#allocation2 + $0x38] sm:$0xff] %v208
    %255 = vst [vmem:[#allocation2 + $0x40] sm:$0xff] %v213
    %256 = vst [vmem:[#allocation2 + $0x48] sm:$0xff] %v216
    %257 = vst [vmem:[#allocation2 + $0x50] sm:$0xff] %v221
    %258 = vst [vmem:[#allocation2 + $0x58] sm:$0xff] %v224
    %259 = vst [vmem:[#allocation2 + $0x60] sm:$0xff] %v229
    %260 = vst [vmem:[#allocation2 + $0x68] sm:$0xff] %v232
    %261 = vst [vmem:[#allocation2 + $0x70] sm:$0xff] %v237
    %262 = vst [vmem:[#allocation2 + $0x78] sm:$0xff] %v240
  $region21: #{gcn_feature_extraction_forward.3} parent=0 // pred_fallthru
    _
  %p263 = scmp.gt.s32.totalorder 0, 0
  // Predicated region
  $region22: #{gcn_feature_extraction_forward.3} parent=0 // pred_check
    %p264 = pneg %p263
  $region23: #{gcn_feature_extraction_forward.3} parent=0 // pred_check_branch
    %266 = sbr.rel (%p264) target = $region25
  $region24: #{gcn_feature_extraction_forward.3} parent=0 // pred_region
    %v267 = vld [vmem:[#allocation2] sm:$0xff]
    %v268 = vld [vmem:[#allocation2 + $0x8] sm:$0xff]
    %v269 = vld [vmem:[#allocation2 + $0x10] sm:$0xff]
    %v270 = vld [vmem:[#allocation2 + $0x18] sm:$0xff]
    %v271 = vld [vmem:[#allocation2 + $0x20] sm:$0xff]
    %v272 = vld [vmem:[#allocation2 + $0x28] sm:$0xff]
    %v273 = vld [vmem:[#allocation2 + $0x30] sm:$0xff]
    %v274 = vld [vmem:[#allocation2 + $0x38] sm:$0xff]
    %v275 = vld [vmem:[#allocation2 + $0x40] sm:$0xff]
    %v276 = vld [vmem:[#allocation2 + $0x48] sm:$0xff]
    %v277 = vld [vmem:[#allocation2 + $0x50] sm:$0xff]
    %v278 = vld [vmem:[#allocation2 + $0x58] sm:$0xff]
    %v279 = vld [vmem:[#allocation2 + $0x60] sm:$0xff]
    %v280 = vld [vmem:[#allocation2 + $0x68] sm:$0xff]
    %v281 = vld [vmem:[#allocation2 + $0x70] sm:$0xff]
    %v282 = vld [vmem:[#allocation2 + $0x78] sm:$0xff]
    %v283 = vadd.f32 %v267, %v181
    %v284 = vadd.f32 %v268, %v184
    %v285 = vadd.f32 %v269, %v189
    %v286 = vadd.f32 %v270, %v192
    %v287 = vadd.f32 %v271, %v197
    %v288 = vadd.f32 %v272, %v200
    %v289 = vadd.f32 %v273, %v205
    %v290 = vadd.f32 %v274, %v208
    %v291 = vadd.f32 %v275, %v213
    %v292 = vadd.f32 %v276, %v216
    %v293 = vadd.f32 %v277, %v221
    %v294 = vadd.f32 %v278, %v224
    %v295 = vadd.f32 %v279, %v229
    %v296 = vadd.f32 %v280, %v232
    %v297 = vadd.f32 %v281, %v237
    %v298 = vadd.f32 %v282, %v240
    %299 = vst [vmem:[#allocation2] sm:$0xff] %v283
    %300 = vst [vmem:[#allocation2 + $0x8] sm:$0xff] %v284
    %301 = vst [vmem:[#allocation2 + $0x10] sm:$0xff] %v285
    %302 = vst [vmem:[#allocation2 + $0x18] sm:$0xff] %v286
    %303 = vst [vmem:[#allocation2 + $0x20] sm:$0xff] %v287
    %304 = vst [vmem:[#allocation2 + $0x28] sm:$0xff] %v288
    %305 = vst [vmem:[#allocation2 + $0x30] sm:$0xff] %v289
    %306 = vst [vmem:[#allocation2 + $0x38] sm:$0xff] %v290
    %307 = vst [vmem:[#allocation2 + $0x40] sm:$0xff] %v291
    %308 = vst [vmem:[#allocation2 + $0x48] sm:$0xff] %v292
    %309 = vst [vmem:[#allocation2 + $0x50] sm:$0xff] %v293
    %310 = vst [vmem:[#allocation2 + $0x58] sm:$0xff] %v294
    %311 = vst [vmem:[#allocation2 + $0x60] sm:$0xff] %v295
    %312 = vst [vmem:[#allocation2 + $0x68] sm:$0xff] %v296
    %313 = vst [vmem:[#allocation2 + $0x70] sm:$0xff] %v297
    %314 = vst [vmem:[#allocation2 + $0x78] sm:$0xff] %v298
  $region25: #{gcn_feature_extraction_forward.3} parent=0 // pred_fallthru
    _
  // Predicated region
  $region26: #{gcn_feature_extraction_forward.3} parent=0 // pred_check
    %p315 = pneg %p243
  $region27: #{gcn_feature_extraction_forward.3} parent=0 // pred_check_branch
    %317 = sbr.rel (%p315) target = $region29
  $region28: #{gcn_feature_extraction_forward.3} parent=0 // pred_region
    %v318 = vld [vmem:[#allocation2] sm:$0xff]
    %v319 = vld [vmem:[#allocation2 + $0x8] sm:$0xff]
    %v320 = vld [vmem:[#allocation2 + $0x10] sm:$0xff]
    %v321 = vld [vmem:[#allocation2 + $0x18] sm:$0xff]
    %v322 = vld [vmem:[#allocation2 + $0x20] sm:$0xff]
    %v323 = vld [vmem:[#allocation2 + $0x28] sm:$0xff]
    %v324 = vld [vmem:[#allocation2 + $0x30] sm:$0xff]
    %v325 = vld [vmem:[#allocation2 + $0x38] sm:$0xff]
    %v326 = vld [vmem:[#allocation2 + $0x40] sm:$0xff]
    %v327 = vld [vmem:[#allocation2 + $0x48] sm:$0xff]
    %v328 = vld [vmem:[#allocation2 + $0x50] sm:$0xff]
    %v329 = vld [vmem:[#allocation2 + $0x58] sm:$0xff]
    %v330 = vld [vmem:[#allocation2 + $0x60] sm:$0xff]
    %v331 = vld [vmem:[#allocation2 + $0x68] sm:$0xff]
    %v332 = vld [vmem:[#allocation2 + $0x70] sm:$0xff]
    %v333 = vld [vmem:[#allocation2 + $0x78] sm:$0xff]
    %v334 = vpack.c.bf16 %v319, %v318
    %v335 = vpack.c.bf16 %v321, %v320
    %v336 = vpack.c.bf16 %v323, %v322
    %v337 = vpack.c.bf16 %v325, %v324
    %v338 = vpack.c.bf16 %v327, %v326
    %v339 = vpack.c.bf16 %v329, %v328
    %v340 = vpack.c.bf16 %v331, %v330
    %v341 = vpack.c.bf16 %v333, %v332
    %v342 = vld [vmem:[%s2] sm:$0xf]
    %v343 = vld [vmem:[%s2 + $0x4] sm:$0xf]
    %v344 = vld [vmem:[%s2 + $0x8] sm:$0xf]
    %v345 = vld [vmem:[%s2 + $0xc] sm:$0xf]
    %v346 = vld [vmem:[%s2 + $0x10] sm:$0xf]
    %v347 = vld [vmem:[%s2 + $0x14] sm:$0xf]
    %v348 = vld [vmem:[%s2 + $0x18] sm:$0xf]
    %v349 = vld [vmem:[%s2 + $0x1c] sm:$0xf]
    %v350 = vld [vmem:[%s2 + $0x20] sm:$0xf]
    %v351 = vld [vmem:[%s2 + $0x24] sm:$0xf]
    %v352 = vld [vmem:[%s2 + $0x28] sm:$0xf]
    %v353 = vld [vmem:[%s2 + $0x2c] sm:$0xf]
    %v354 = vld [vmem:[%s2 + $0x30] sm:$0xf]
    %v355 = vld [vmem:[%s2 + $0x34] sm:$0xf]
    %v356 = vld [vmem:[%s2 + $0x38] sm:$0xf]
    %v357 = vld [vmem:[%s2 + $0x3c] sm:$0xf]
    %v358 = vld [vmem:[%s3] sm:$0x1]
    %v360 = vlaneseq
    %v361 = vshrl.u32 %v360, 7
    %v362 = vsub.s32 0, %v361
    %v363 = vrot.slane %v358, %v362
    %v381 = vunpack.c.l.b16 %v342
    %v382 = vunpack.c.l.b16 %v343
    %v383 = vunpack.c.l.b16 %v344
    %v384 = vunpack.c.l.b16 %v345
    %v385 = vunpack.c.l.b16 %v346
    %v386 = vunpack.c.l.b16 %v347
    %v387 = vunpack.c.l.b16 %v348
    %v388 = vunpack.c.l.b16 %v349
    %v389 = vunpack.c.l.b16 %v350
    %v390 = vunpack.c.l.b16 %v351
    %v391 = vunpack.c.l.b16 %v352
    %v392 = vunpack.c.l.b16 %v353
    %v393 = vunpack.c.l.b16 %v354
    %v394 = vunpack.c.l.b16 %v355
    %v395 = vunpack.c.l.b16 %v356
    %v396 = vunpack.c.l.b16 %v357
    %v397 = vpack.c.b16 %v382, %v381
    %v398 = vpack.c.b16 %v384, %v383
    %v399 = vpack.c.b16 %v386, %v385
    %v400 = vpack.c.b16 %v388, %v387
    %v401 = vpack.c.b16 %v390, %v389
    %v402 = vpack.c.b16 %v392, %v391
    %v403 = vpack.c.b16 %v394, %v393
    %v404 = vpack.c.b16 %v396, %v395
    %413 = vmatprep.subr.bf16.mxu0 0
    %414 = vmatpush1.bf16.msra.mxu0 %v397
    %415 = vmatprep.subr.bf16.mxu0 0
    %416 = vmatpush1.bf16.msra.mxu0 %v398
    %417 = vmatprep.subr.bf16.mxu0 0
    %418 = vmatpush1.bf16.msra.mxu0 %v399
    %419 = vmatprep.subr.bf16.mxu0 0
    %420 = vmatpush1.bf16.msra.mxu0 %v400
    %421 = vmatprep.subr.bf16.mxu0 0
    %422 = vmatpush1.bf16.msra.mxu0 %v401
    %423 = vmatprep.subr.bf16.mxu0 0
    %424 = vmatpush1.bf16.msra.mxu0 %v402
    %425 = vmatprep.subr.bf16.mxu0 0
    %426 = vmatpush1.bf16.msra.mxu0 %v403
    %427 = vmatprep.subr.bf16.mxu0 0
    %428 = vmatpush1.bf16.msra.mxu0 %v404
    %429 = vmatprep.subr.bf16.mxu0 0
    %430 = vmatpush1.bf16.msra.mxu0 0
    %431 = vmatprep.subr.bf16.mxu0 0
    %432 = vmatpush1.bf16.msra.mxu0 0
    %433 = vmatprep.subr.bf16.mxu0 0
    %434 = vmatpush1.bf16.msra.mxu0 0
    %435 = vmatprep.subr.bf16.mxu0 0
    %436 = vmatpush1.bf16.msra.mxu0 0
    %437 = vmatprep.subr.bf16.mxu0 0
    %438 = vmatpush1.bf16.msra.mxu0 0
    %439 = vmatprep.subr.bf16.mxu0 0
    %440 = vmatpush1.bf16.msra.mxu0 0
    %441 = vmatprep.subr.bf16.mxu0 0
    %442 = vmatpush1.bf16.msra.mxu0 0
    %443 = vmatprep.subr.bf16.mxu0 0
    %444 = vmatpush1.bf16.msra.mxu0 0
    %445 = vmatprep.mubr.bf16.mxu0 0
    %446 = vmatmul.mubr.bf16.gmra.mrb[0].mxu0 %v334
    %v447 = vpop.f32.mrb[0].mxu0
    %v448 = vadd.f32 %v363, %v447
    %v449 = vpop.f32.mrb[0].mxu0
    %v450 = vpop.f32.mrb[0].mxu0
    %v451 = vadd.f32 %v363, %v450
    %v452 = vpop.f32.mrb[0].mxu0
    %453 = vmatprep.mubr.bf16.mxu0 0
    %454 = vmatmul.mubr.bf16.gmra.mrb[0].mxu0 %v335
    %v455 = vpop.f32.mrb[0].mxu0
    %v456 = vadd.f32 %v363, %v455
    %v457 = vpop.f32.mrb[0].mxu0
    %v458 = vpop.f32.mrb[0].mxu0
    %v459 = vadd.f32 %v363, %v458
    %v460 = vpop.f32.mrb[0].mxu0
    %461 = vmatprep.mubr.bf16.mxu0 0
    %462 = vmatmul.mubr.bf16.gmra.mrb[0].mxu0 %v336
    %v463 = vpop.f32.mrb[0].mxu0
    %v464 = vadd.f32 %v363, %v463
    %v465 = vpop.f32.mrb[0].mxu0
    %v466 = vpop.f32.mrb[0].mxu0
    %v467 = vadd.f32 %v363, %v466
    %v468 = vpop.f32.mrb[0].mxu0
    %469 = vmatprep.mubr.bf16.mxu0 0
    %470 = vmatmul.mubr.bf16.gmra.mrb[0].mxu0 %v337
    %v471 = vpop.f32.mrb[0].mxu0
    %v472 = vadd.f32 %v363, %v471
    %v473 = vpop.f32.mrb[0].mxu0
    %v474 = vpop.f32.mrb[0].mxu0
    %v475 = vadd.f32 %v363, %v474
    %v476 = vpop.f32.mrb[0].mxu0
    %477 = vmatprep.mubr.bf16.mxu0 0
    %478 = vmatmul.mubr.bf16.gmra.mrb[0].mxu0 %v338
    %v479 = vpop.f32.mrb[0].mxu0
    %v480 = vadd.f32 %v363, %v479
    %v481 = vpop.f32.mrb[0].mxu0
    %v482 = vpop.f32.mrb[0].mxu0
    %v483 = vadd.f32 %v363, %v482
    %v484 = vpop.f32.mrb[0].mxu0
    %485 = vmatprep.mubr.bf16.mxu0 0
    %486 = vmatmul.mubr.bf16.gmra.mrb[0].mxu0 %v339
    %v487 = vpop.f32.mrb[0].mxu0
    %v488 = vadd.f32 %v363, %v487
    %v489 = vpop.f32.mrb[0].mxu0
    %v490 = vpop.f32.mrb[0].mxu0
    %v491 = vadd.f32 %v363, %v490
    %v492 = vpop.f32.mrb[0].mxu0
    %493 = vmatprep.mubr.bf16.mxu0 0
    %494 = vmatmul.mubr.bf16.gmra.mrb[0].mxu0 %v340
    %v495 = vpop.f32.mrb[0].mxu0
    %v496 = vadd.f32 %v363, %v495
    %v497 = vpop.f32.mrb[0].mxu0
    %v498 = vpop.f32.mrb[0].mxu0
    %v499 = vadd.f32 %v363, %v498
    %v500 = vpop.f32.mrb[0].mxu0
    %501 = vmatprep.mubr.bf16.mxu0 0
    %502 = vmatmul.mubr.bf16.gmra.mrb[0].mxu0 %v341
    %v503 = vpop.f32.mrb[0].mxu0
    %v504 = vadd.f32 %v363, %v503
    %v505 = vpop.f32.mrb[0].mxu0
    %v506 = vpop.f32.mrb[0].mxu0
    %v507 = vadd.f32 %v363, %v506
    %v508 = vpop.f32.mrb[0].mxu0
    %509 = vdwg.mxu0
    %v510 = vmax.f32 %v448, 0.0
    %v511 = vmax.f32 %v451, 0.0
    %v512 = vmax.f32 %v456, 0.0
    %v513 = vmax.f32 %v459, 0.0
    %v514 = vmax.f32 %v464, 0.0
    %v515 = vmax.f32 %v467, 0.0
    %v516 = vmax.f32 %v472, 0.0
    %v517 = vmax.f32 %v475, 0.0
    %v518 = vmax.f32 %v480, 0.0
    %v519 = vmax.f32 %v483, 0.0
    %v520 = vmax.f32 %v488, 0.0
    %v521 = vmax.f32 %v491, 0.0
    %v522 = vmax.f32 %v496, 0.0
    %v523 = vmax.f32 %v499, 0.0
    %v524 = vmax.f32 %v504, 0.0
    %v525 = vmax.f32 %v507, 0.0
    %526 = vst [vmem:[%s4] sm:$0xff] %v510
    %527 = vst [vmem:[%s4 + $0x8] sm:$0xff] %v511
    %528 = vst [vmem:[%s4 + $0x10] sm:$0xff] %v512
    %529 = vst [vmem:[%s4 + $0x18] sm:$0xff] %v513
    %530 = vst [vmem:[%s4 + $0x20] sm:$0xff] %v514
    %531 = vst [vmem:[%s4 + $0x28] sm:$0xff] %v515
    %532 = vst [vmem:[%s4 + $0x30] sm:$0xff] %v516
    %533 = vst [vmem:[%s4 + $0x38] sm:$0xff] %v517
    %534 = vst [vmem:[%s4 + $0x40] sm:$0xff] %v518
    %535 = vst [vmem:[%s4 + $0x48] sm:$0xff] %v519
    %536 = vst [vmem:[%s4 + $0x50] sm:$0xff] %v520
    %537 = vst [vmem:[%s4 + $0x58] sm:$0xff] %v521
    %538 = vst [vmem:[%s4 + $0x60] sm:$0xff] %v522
    %539 = vst [vmem:[%s4 + $0x68] sm:$0xff] %v523
    %540 = vst [vmem:[%s4 + $0x70] sm:$0xff] %v524
    %541 = vst [vmem:[%s4 + $0x78] sm:$0xff] %v525
  $region29: #{gcn_feature_extraction_forward.3} parent=0 // pred_fallthru
    _
  // Predicated region
  $region30: #{gcn_feature_extraction_forward.3} parent=0 // pred_check
    _
  $region31: #{gcn_feature_extraction_forward.3} parent=0 // pred_check_branch
    %543 = sbr.rel (0) target = $region33
  $region32: #{gcn_feature_extraction_forward.3} parent=0 // pred_region
    _
  $region33: #{gcn_feature_extraction_forward.3} parent=0 // pred_fallthru
    _
  // Predicated region
  $region34: #{gcn_feature_extraction_forward.3} parent=0 // pred_check
    _
  $region35: #{gcn_feature_extraction_forward.3} parent=0 // pred_check_branch
    %545 = sbr.rel (0) target = $region37
  $region36: #{gcn_feature_extraction_forward.3} parent=0 // pred_region
    _
  $region37: #{gcn_feature_extraction_forward.3} parent=0 // pred_fallthru
    _

</llo_original>
